<compile_context>
chip_gen: v6e
topology: v6e:2x2x1
jax: 0.10.0
libtpu: 0.0.40
codegen_flags: <defaults>
</compile_context>

<pallas_src>
import functools

import jax
import jax.numpy as jnp
from jax.experimental import pallas as pl
from jax.experimental.pallas import tpu as pltpu


def _round_up(x, m):
    return ((x + m - 1) // m) * m


def _transition_mean_kernel(x_ref, a_ref, mean_ref):
    # x_ref   : (TM, Dp)  row tile of (possibly lane-packed) latents
    # a_ref   : (Dp, Dp)  transition matrix (or kron(I_pack, A)); constant
    #                     index_map -> stays VMEM resident across grid steps
    # mean_ref: (TM, Dp)  output tile = x @ a^T (transpose folded into the
    #                     contraction dims; no in-kernel XLU transpose)
    mean = jax.lax.dot_general(
        x_ref[...],
        a_ref[...],
        dimension_numbers=(((1,), (1,)), ((), ())),
        preferred_element_type=jnp.float32,
    )
    mean_ref[...] = mean.astype(mean_ref.dtype)


@functools.partial(jax.jit, static_argnames=("row_tile", "small_n_threshold"))
def transition_forward(previous_latent, A, Q, *, row_tile=8192,
                       small_n_threshold=512):
    """previous_latent: (B, P, D); A, Q: (D, D).

    Returns (mean, Q, batch_shape):
      mean        : (B, P, D) = A @ previous_latent per (batch, particle)
      Q           : (D, D)    shared covariance (left un-broadcast; torch's
                              .expand is a zero-copy view)
      batch_shape : (B, P)    FULLY_EXPANDED batch-shape metadata
    """
    B, P, D = previous_latent.shape
    N = B * P

    # Tiny problems: kernel launch + grid bookkeeping dominate; XLA einsum wins.
    if N < small_n_threshold:
        mean = jnp.einsum("ij,bpj->bpi", A, previous_latent)
        return mean, Q, (B, P)

    x = previous_latent.reshape(N, D)

    # --- Lane packing: pack `pack` rows per 128-lane vreg row -----------------
    pack = 128 // D if (D < 128 and 128 % D == 0) else 1
    if pack > 1 and N % pack == 0:
        Np = N // pack
        Dp = pack * D
        x_in = x.reshape(Np, Dp)                      # contiguous -> free reshape
        # Block-diagonal transition: kernel contracts a's last dim, so pass
        # kron(I, A); (x_packed @ kron(I, A)^T) applies A^T per 32-lane group.
        A_in = jnp.kron(jnp.eye(pack, dtype=A.dtype), A)
    else:
        pack = 1
        Np, Dp = N, D
        x_in = x
        A_in = A

    # --- Tile selection --------------------------------------------------------
    # Cap at row_tile packed rows (keeps double-buffered in+out <= ~16 MiB),
    # but never fewer than 2 grid steps so v7x's two TensorCores both get work.
    tm = min(row_tile, _round_up(pl.cdiv(Np, 2), 8))
    if tm >= Np:
        tm = Np          # single full block (exempt from the sublane-8 rule)
    grid = (pl.cdiv(Np, tm),)

    cost = pl.CostEstimate(
        flops=2 * Np * Dp * Dp,                       # dense block-diag matmul
        bytes_accessed=(2 * Np * Dp + Dp * Dp) * x.dtype.itemsize,
        transcendentals=0,
    )

    out = pl.pallas_call(
        _transition_mean_kernel,
        out_shape=jax.ShapeDtypeStruct((Np, Dp), previous_latent.dtype),
        grid=grid,
        in_specs=[
            pl.BlockSpec((tm, Dp), lambda i: (i, 0)),
            # Constant index map: A stays resident in VMEM across all steps.
            pl.BlockSpec((Dp, Dp), lambda i: (0, 0)),
        ],
        out_specs=pl.BlockSpec((tm, Dp), lambda i: (i, 0)),
        compiler_params=pltpu.CompilerParams(
            # Row axis is embarrassingly parallel -> shards across v7x's 2 TCs.
            dimension_semantics=("parallel",),
            vmem_limit_bytes=32 * 1024 * 1024,
        ),
        cost_estimate=cost,
    )(x_in, A_in)

    mean = out.reshape(B, P, D)                       # pure metadata reshape

    # TODO(synk): the torch module wraps (mean, Q-expanded) in a
    # torch.distributions.MultivariateNormal with aesmc FULLY_EXPANDED batch
    # shape metadata; distributions have no Pallas equivalent, so we return the
    # parameters plus the batch shape and leave the covariance un-broadcast.
    return mean, Q, (B, P)


if __name__ == "__main__":
    key = jax.random.PRNGKey(0)
    k_a, k_x1, k_x2, k_x3, k_x4 = jax.random.split(key, 5)

    dim_latents = 32
    A = jax.random.normal(k_a, (dim_latents, dim_latents), dtype=jnp.float32) * 0.1
    Q = 0.1 * jnp.eye(dim_latents, dtype=jnp.float32)  # SPD covariance

    def check(latent):
        mean, Q_out, batch_shape = transition_forward(latent, A, Q)
        jax.block_until_ready(mean)
        jax.block_until_ready(Q_out)
        ref = jnp.einsum("ij,bpj->bpi", A, latent)
        assert mean.shape == latent.shape
        assert Q_out.shape == (dim_latents, dim_latents)
        assert batch_shape == latent.shape[:2]
        assert jnp.allclose(mean, ref, atol=1e-5, rtol=1e-5)

    # 1) Main case: Pallas lane-packed path, 2 grid steps (N = 1024, pack = 4).
    check(jax.random.normal(k_x1, (2, 512, dim_latents), dtype=jnp.float32))

    # 2) Tiny case: einsum fast path (N = 16 < 512).
    check(jax.random.normal(k_x2, (2, 8, dim_latents), dtype=jnp.float32))

    # 3) Packed path with a ragged last block (N = 2400 -> Np = 600, tm = 304).
    check(jax.random.normal(k_x3, (4, 600, dim_latents), dtype=jnp.float32))

    # 4) Unpacked fallback (N = 513 not divisible by pack=4) + ragged block.
    check(jax.random.normal(k_x4, (1, 513, dim_latents), dtype=jnp.float32))

    print("KERNEL_OK")
</pallas_src>

<mosaic_0001>
module attributes {stable_mosaic.version = 11 : i64} {
  func.func @_transition_mean_kernel(%arg0: i32, %arg1: memref<128x128xf32, #tpu.memory_space<vmem>>, %arg2: memref<128x128xf32, #tpu.memory_space<vmem>>, %arg3: memref<128x128xf32, #tpu.memory_space<vmem>>) attributes {dimension_semantics = [#tpu.dimension_semantics<parallel>], iteration_bounds = array<i64: 2>, scalar_prefetch = 0 : i64, scratch_operands = 0 : i64, tpu.core_type = #tpu.core_type<tc>, window_params = [{transform_indices = @transform_0, window_bounds = array<i64: 128, 128>}, {pipeline_mode = #tpu.pipeline_mode<synchronous>, transform_indices = @transform_1, window_bounds = array<i64: 128, 128>}, {transform_indices = @transform_2, window_bounds = array<i64: 128, 128>}]} {
    %c0 = arith.constant 0 : index
    %c0_0 = arith.constant 0 : index
    %0 = vector.load %arg1[%c0, %c0_0] : memref<128x128xf32, #tpu.memory_space<vmem>>, vector<128x128xf32>
    %c0_1 = arith.constant 0 : index
    %c0_2 = arith.constant 0 : index
    %1 = vector.load %arg2[%c0_1, %c0_2] : memref<128x128xf32, #tpu.memory_space<vmem>>, vector<128x128xf32>
    %cst = arith.constant dense<0.000000e+00> : vector<128x128xf32>
    %2 = tpu.matmul %0, %1, %cst {dimension_numbers = #tpu.dot_dimension_numbers<[1], [1], [0], [0], [0, 0, 1, 0], [], []>} : vector<128x128xf32>, vector<128x128xf32>, vector<128x128xf32> -> vector<128x128xf32>
    %c0_3 = arith.constant 0 : index
    %c0_4 = arith.constant 0 : index
    %3 = vector.load %arg3[%c0_3, %c0_4] : memref<128x128xf32, #tpu.memory_space<vmem>>, vector<128x128xf32>
    tpu.vector_store %arg3[%c0_3, %c0_4], %2 {strides = array<i32>} : memref<128x128xf32, #tpu.memory_space<vmem>>, vector<128x128xf32>,
    return
  }
  func.func @transform_0(%arg0: i32) -> (i32, i32) {
    %c0_i32 = arith.constant 0 : i32
    %c0_i32_0 = arith.constant 0 : i32
    return %arg0, %c0_i32 : i32, i32
  }
  func.func @transform_1(%arg0: i32) -> (i32, i32) {
    %c0_i32 = arith.constant 0 : i32
    %c0_i32_0 = arith.constant 0 : i32
    %c0_i32_1 = arith.constant 0 : i32
    return %c0_i32, %c0_i32_0 : i32, i32
  }
  func.func @transform_2(%arg0: i32) -> (i32, i32) {
    %c0_i32 = arith.constant 0 : i32
    %c0_i32_0 = arith.constant 0 : i32
    return %arg0, %c0_i32 : i32, i32
  }
}

</mosaic_0001>

<llo_original>
// kernel: transition_forward.1
$region0: #{transition_forward.1}
  #allocation0 [shape = 'u32[]', space=smem, size = 0x4, offset = 0x4, fixed_abs, tag = 'smem constant byte address 0x4 - core index']
  #allocation1 [shape = 'u32[144,128]{1,0:T(1,128)}', space=vmem, size = 0x12000, scoped, tag = 'internal scratch']
  %s0 = inlined_call_operand.vmem [shape: f32[256,128], index: 0, kind: input, shape index: {}]
  %s1 = inlined_call_operand.vmem [shape: f32[128,128], index: 1, kind: input, shape index: {}]
  %s2 = inlined_call_operand.vmem [shape: f32[256,128], index: 2, kind: output, shape index: {}]
  %s3 = sld [smem:[#allocation0]]
  $region41: #{transition_forward.1} parent=0
    _
  %s5 = ssub.s32 1, %s3
  %s6 = scalar_select 0, %s5, %s3
  loop: start=0, step=1, limit=4
  $region2: #{transition_forward.1} parent=0 // loop_pre_header
    _
  $region3: #{transition_forward.1} parent=0 // loop_header
    %s8 = sphi 0, %s12
    %p9 = scmp.ge.s32.totalorder %s8, 4
    %s18 = sphi 0, %s20
    %s21 = sphi 0, %s18
    %s22 = sphi 0, %s21
    %s38 = sphi 0, %s22
    %s42 = sphi 0, %s42
    %s44 = sphi 0, %s42
    %s45 = sphi 0, %s44
    %s59 = sphi 0, %s45
    %s65 = sphi 0, %s67
    %s68 = sphi 0, %s65
    %s69 = sphi 0, %s68
    %s85 = sphi 0, %s69
  $region4: #{transition_forward.1} parent=0 // loop_header_branch
    %11 = sbr.rel (%p9) target = $region8
  $region5: #{transition_forward.1} parent=0 // loop_body
    %s13 = ssub.s32 %s8, 1
    %s14 = ssub.s32 %s8, 2
    %s15 = sadd.s32 %s8, 1
    %s16 = ssub.s32 %s8, %s15
    %p17 = scmp.eq.s32.totalorder %s16, 0
    %s19 = sadd.s32 %s18, 1
    %s20 = scalar_select %p17, %s18, %s19
    %p23 = pneg %p17
    %p24 = scmp.eq.s32.totalorder %s8, 1
    %p25 = por %p23, %p24
    %p26 = scmp.ne.s32.totalorder %s18, %s21
    %p27 = scmp.eq.s32.totalorder %s8, 0
    %p28 = por %p26, %p27
    %p29 = scmp.ne.s32.totalorder %s18, %s21
    %p30 = scmp.eq.s32.totalorder %s13, 1
    %p31 = por %p29, %p30
    %p32 = scmp.ne.s32.totalorder %s21, %s22
    %p33 = scmp.eq.s32.totalorder %s13, 0
    %p34 = por %p32, %p33
    %p35 = scmp.ne.s32.totalorder %s21, %s22
    %p36 = scmp.eq.s32.totalorder %s14, 1
    %p37 = por %p35, %p36
    %p39 = scmp.ne.s32.totalorder %s22, %s38
    %p40 = scmp.eq.s32.totalorder %s14, 0
    %p41 = por %p39, %p40
    %s43 = sadd.s32 %s42, 1
    %p46 = scmp.eq.s32.totalorder %s8, 1
    %p47 = scmp.ne.s32.totalorder %s42, %s44
    %p48 = scmp.eq.s32.totalorder %s8, 0
    %p49 = por %p47, %p48
    %p50 = scmp.ne.s32.totalorder %s42, %s44
    %p51 = scmp.eq.s32.totalorder %s13, 1
    %p52 = por %p50, %p51
    %p53 = scmp.ne.s32.totalorder %s44, %s45
    %p54 = scmp.eq.s32.totalorder %s13, 0
    %p55 = por %p53, %p54
    %p56 = scmp.ne.s32.totalorder %s44, %s45
    %p57 = scmp.eq.s32.totalorder %s14, 1
    %p58 = por %p56, %p57
    %p60 = scmp.ne.s32.totalorder %s45, %s59
    %p61 = scmp.eq.s32.totalorder %s14, 0
    %p62 = por %p60, %p61
    %s63 = ssub.s32 %s8, %s15
    %p64 = scmp.eq.s32.totalorder %s63, 0
    %s66 = sadd.s32 %s65, 1
    %s67 = scalar_select %p64, %s65, %s66
    %p70 = pneg %p64
    %p71 = scmp.eq.s32.totalorder %s8, 1
    %p72 = por %p70, %p71
    %p73 = scmp.ne.s32.totalorder %s65, %s68
    %p74 = scmp.eq.s32.totalorder %s8, 0
    %p75 = por %p73, %p74
    %p76 = scmp.ne.s32.totalorder %s65, %s68
    %p77 = scmp.eq.s32.totalorder %s13, 1
    %p78 = por %p76, %p77
    %p79 = scmp.ne.s32.totalorder %s68, %s69
    %p80 = scmp.eq.s32.totalorder %s13, 0
    %p81 = por %p79, %p80
    %p82 = scmp.ne.s32.totalorder %s68, %s69
    %p83 = scmp.eq.s32.totalorder %s14, 1
    %p84 = por %p82, %p83
    %p86 = scmp.ne.s32.totalorder %s69, %s85
    %p87 = scmp.eq.s32.totalorder %s14, 0
    %p88 = por %p86, %p87
    %p89 = scmp.le.s32.totalorder 1, %s8
    %p90 = scmp.lt.s32.totalorder %s8, 3
    %p91 = pnand %p89, %p90
    %p92 = pneg %p91
    // Predicated region
    $region9: #{transition_forward.1} parent=5 // pred_check
      _
    $region10: #{transition_forward.1} parent=5 // pred_check_branch
      %94 = sbr.rel (%p91) target = $region12
    $region11: #{transition_forward.1} parent=5 // pred_region
      %s95 = ssub.s32 %s8, 1
      // Predicated region
      $region13: #{transition_forward.1} parent=11 // pred_check
        %p96 = pneg %p55
      $region14: #{transition_forward.1} parent=11 // pred_check_branch
        %98 = sbr.rel (%p96) target = $region16
      $region15: #{transition_forward.1} parent=11 // pred_region
        _
      $region16: #{transition_forward.1} parent=11 // pred_fallthru
        _
    $region12: #{transition_forward.1} parent=5 // pred_fallthru
      _
    %p99 = scmp.lt.s32.totalorder %s8, 2
    // Predicated region
    $region17: #{transition_forward.1} parent=5 // pred_check
      %p100 = pneg %p99
    $region18: #{transition_forward.1} parent=5 // pred_check_branch
      %102 = sbr.rel (%p100) target = $region20
    $region19: #{transition_forward.1} parent=5 // pred_region
      // Predicated region
      $region21: #{transition_forward.1} parent=19 // pred_check
        %p103 = pneg %p28
      $region22: #{transition_forward.1} parent=19 // pred_check_branch
        %105 = sbr.rel (%p103) target = $region24
      $region23: #{transition_forward.1} parent=19 // pred_region
        %s106 = smul.u32 16, %s8
        %p107 = scmp.lt.s32.totalorder %s106, 31
        %s108 = scalar_select %p107, %s106, 31
        %s109 = smul.addr %s108, 8
        %s110 = scalar_lea.vmem %s0, %s109
        %s111 = smul.u32 16, %s8
      $region24: #{transition_forward.1} parent=19 // pred_fallthru
        _
    $region20: #{transition_forward.1} parent=5 // pred_fallthru
      _
    %p112 = scmp.le.s32.totalorder 1, %s8
    %p113 = scmp.lt.s32.totalorder %s8, 3
    %p114 = pnand %p112, %p113
    %p115 = pneg %p114
    // Predicated region
    $region25: #{transition_forward.1} parent=5 // pred_check
      _
    $region26: #{transition_forward.1} parent=5 // pred_check_branch
      %117 = sbr.rel (%p114) target = $region28
    $region27: #{transition_forward.1} parent=5 // pred_region
      %s118 = ssub.s32 %s8, 1
      %s119 = smul.u32 16, %s13
      %p120 = scmp.lt.s32.totalorder %s119, 31
      %s121 = scalar_select %p120, %s119, 31
      %s122 = smul.addr %s121, 8
      %s123 = scalar_lea.vmem %s0, %s122
      %p124 = pneg %p34
      %p125 = pneg %p31
      %p126 = pneg %p55
      %p127 = pneg %p52
      %p128 = pneg %p81
      %p129 = pneg %p78
      %s130 = smul.u32 16, %s13
      %p131 = scmp.lt.s32.totalorder %s130, 31
      %s132 = scalar_select %p131, %s130, 31
      %s133 = smul.addr %s132, 8
      %s134 = scalar_lea.vmem %s2, %s133
      %s135 = smul.u32 16, %s13
      %p136 = scmp.lt.s32.totalorder %s135, 31
      %s137 = scalar_select %p136, %s135, 31
      %s138 = smul.addr %s137, 8
      %s139 = scalar_lea.vmem %s0, %s138
      %s140 = smul.u32 16, %s13
      %s141 = smul.u32 16, %s13
      %p142 = scmp.lt.s32.totalorder %s141, 31
      %s143 = scalar_select %p142, %s141, 31
      %s144 = smul.addr %s143, 8
      %s145 = scalar_lea.vmem %s2, %s144
      %s146 = smul.u32 16, %s13
      %v147 = vld [vmem:[%s139] sm:$0xff]
      %v148 = vld [vmem:[%s139 + $0x8] sm:$0xff]
      %v149 = vld [vmem:[%s139 + $0x10] sm:$0xff]
      %v150 = vld [vmem:[%s139 + $0x18] sm:$0xff]
      %v151 = vld [vmem:[%s139 + $0x20] sm:$0xff]
      %v152 = vld [vmem:[%s139 + $0x28] sm:$0xff]
      %v153 = vld [vmem:[%s139 + $0x30] sm:$0xff]
      %v154 = vld [vmem:[%s139 + $0x38] sm:$0xff]
      %v155 = vld [vmem:[%s139 + $0x40] sm:$0xff]
      %v156 = vld [vmem:[%s139 + $0x48] sm:$0xff]
      %v157 = vld [vmem:[%s139 + $0x50] sm:$0xff]
      %v158 = vld [vmem:[%s139 + $0x58] sm:$0xff]
      %v159 = vld [vmem:[%s139 + $0x60] sm:$0xff]
      %v160 = vld [vmem:[%s139 + $0x68] sm:$0xff]
      %v161 = vld [vmem:[%s139 + $0x70] sm:$0xff]
      %v162 = vld [vmem:[%s139 + $0x78] sm:$0xff]
      %v163 = vld [vmem:[%s1] sm:$0xff]
      %v164 = vld [vmem:[%s1 + $0x8] sm:$0xff]
      %v165 = vld [vmem:[%s1 + $0x10] sm:$0xff]
      %v166 = vld [vmem:[%s1 + $0x18] sm:$0xff]
      %v167 = vld [vmem:[%s1 + $0x20] sm:$0xff]
      %v168 = vld [vmem:[%s1 + $0x28] sm:$0xff]
      %v169 = vld [vmem:[%s1 + $0x30] sm:$0xff]
      %v170 = vld [vmem:[%s1 + $0x38] sm:$0xff]
      %v171 = vld [vmem:[%s1 + $0x40] sm:$0xff]
      %v172 = vld [vmem:[%s1 + $0x48] sm:$0xff]
      %v173 = vld [vmem:[%s1 + $0x50] sm:$0xff]
      %v174 = vld [vmem:[%s1 + $0x58] sm:$0xff]
      %v175 = vld [vmem:[%s1 + $0x60] sm:$0xff]
      %v176 = vld [vmem:[%s1 + $0x68] sm:$0xff]
      %v177 = vld [vmem:[%s1 + $0x70] sm:$0xff]
      %v178 = vld [vmem:[%s1 + $0x78] sm:$0xff]
      %179 = vmatprep.subr.mxu0 0.0
      %180 = vmatpush1.xpose.msra.mxu0 %v178
      %181 = vmatprep.subr.mxu0 0.0
      %182 = vmatpush1.xpose.msra.mxu0 %v177
      %183 = vmatprep.subr.mxu0 0.0
      %184 = vmatpush1.xpose.msra.mxu0 %v176
      %185 = vmatprep.subr.mxu0 0.0
      %186 = vmatpush1.xpose.msra.mxu0 %v175
      %187 = vmatprep.subr.mxu0 0.0
      %188 = vmatpush1.xpose.msra.mxu0 %v174
      %189 = vmatprep.subr.mxu0 0.0
      %190 = vmatpush1.xpose.msra.mxu0 %v173
      %191 = vmatprep.subr.mxu0 0.0
      %192 = vmatpush1.xpose.msra.mxu0 %v172
      %193 = vmatprep.subr.mxu0 0.0
      %194 = vmatpush1.xpose.msra.mxu0 %v171
      %195 = vmatprep.subr.mxu0 0.0
      %196 = vmatpush1.xpose.msra.mxu0 %v170
      %197 = vmatprep.subr.mxu0 0.0
      %198 = vmatpush1.xpose.msra.mxu0 %v169
      %199 = vmatprep.subr.mxu0 0.0
      %200 = vmatpush1.xpose.msra.mxu0 %v168
      %201 = vmatprep.subr.mxu0 0.0
      %202 = vmatpush1.xpose.msra.mxu0 %v167
      %203 = vmatprep.subr.mxu0 0.0
      %204 = vmatpush1.xpose.msra.mxu0 %v166
      %205 = vmatprep.subr.mxu0 0.0
      %206 = vmatpush1.xpose.msra.mxu0 %v165
      %207 = vmatprep.subr.mxu0 0.0
      %208 = vmatpush1.xpose.msra.mxu0 %v164
      %209 = vmatprep.subr.mxu0 0.0
      %210 = vmatpush1.xpose.msra.mxu0 %v163
      %211 = vmatprep.subr.mxu0 0.0
      %212 = vmatpush2.xpose.msra.mxu0 0.0
      %213 = vmatprep.subr.mxu0 0.0
      %214 = vmatpush2.xpose.msra.mxu0 0.0
      %215 = vmatprep.subr.mxu0 0.0
      %216 = vmatpush2.xpose.msra.mxu0 0.0
      %217 = vmatprep.subr.mxu0 0.0
      %218 = vmatpush2.xpose.msra.mxu0 0.0
      %219 = vmatprep.subr.mxu0 0.0
      %220 = vmatpush2.xpose.msra.mxu0 0.0
      %221 = vmatprep.subr.mxu0 0.0
      %222 = vmatpush2.xpose.msra.mxu0 0.0
      %223 = vmatprep.subr.mxu0 0.0
      %224 = vmatpush2.xpose.msra.mxu0 0.0
      %225 = vmatprep.subr.mxu0 0.0
      %226 = vmatpush2.xpose.msra.mxu0 0.0
      %227 = vmatprep.subr.mxu0 0.0
      %228 = vmatpush2.xpose.msra.mxu0 0.0
      %229 = vmatprep.subr.mxu0 0.0
      %230 = vmatpush2.xpose.msra.mxu0 0.0
      %231 = vmatprep.subr.mxu0 0.0
      %232 = vmatpush2.xpose.msra.mxu0 0.0
      %233 = vmatprep.subr.mxu0 0.0
      %234 = vmatpush2.xpose.msra.mxu0 0.0
      %235 = vmatprep.subr.mxu0 0.0
      %236 = vmatpush2.xpose.msra.mxu0 0.0
      %237 = vmatprep.subr.mxu0 0.0
      %238 = vmatpush2.xpose.msra.mxu0 0.0
      %239 = vmatprep.subr.mxu0 0.0
      %240 = vmatpush2.xpose.msra.mxu0 0.0
      %241 = vmatprep.subr.mxu0 0.0
      %242 = vmatpush2.xpose.msra.mxu0 0.0
      %243 = vmatprep.mubr.f32.mxu0 0.0
      %244 = vmatmul.mubr.f32.gmra.mxu0 %v147
      %v245 = vpop.f32.mrf.mxu0
      %v246 = vadd.f32 0.0, %v245
      %v247 = vpop.f32.mrf.mxu0
      %248 = vmatprep.mubr.f32.mxu0 0.0
      %249 = vmatmul.mubr.f32.gmra.mxu0 %v148
      %v250 = vpop.f32.mrf.mxu0
      %v251 = vadd.f32 0.0, %v250
      %v252 = vpop.f32.mrf.mxu0
      %253 = vmatprep.mubr.f32.mxu0 0.0
      %254 = vmatmul.mubr.f32.gmra.mxu0 %v149
      %v255 = vpop.f32.mrf.mxu0
      %v256 = vadd.f32 0.0, %v255
      %v257 = vpop.f32.mrf.mxu0
      %258 = vmatprep.mubr.f32.mxu0 0.0
      %259 = vmatmul.mubr.f32.gmra.mxu0 %v150
      %v260 = vpop.f32.mrf.mxu0
      %v261 = vadd.f32 0.0, %v260
      %v262 = vpop.f32.mrf.mxu0
      %263 = vmatprep.mubr.f32.mxu0 0.0
      %264 = vmatmul.mubr.f32.gmra.mxu0 %v151
      %v265 = vpop.f32.mrf.mxu0
      %v266 = vadd.f32 0.0, %v265
      %v267 = vpop.f32.mrf.mxu0
      %268 = vmatprep.mubr.f32.mxu0 0.0
      %269 = vmatmul.mubr.f32.gmra.mxu0 %v152
      %v270 = vpop.f32.mrf.mxu0
      %v271 = vadd.f32 0.0, %v270
      %v272 = vpop.f32.mrf.mxu0
      %273 = vmatprep.mubr.f32.mxu0 0.0
      %274 = vmatmul.mubr.f32.gmra.mxu0 %v153
      %v275 = vpop.f32.mrf.mxu0
      %v276 = vadd.f32 0.0, %v275
      %v277 = vpop.f32.mrf.mxu0
      %278 = vmatprep.mubr.f32.mxu0 0.0
      %279 = vmatmul.mubr.f32.gmra.mxu0 %v154
      %v280 = vpop.f32.mrf.mxu0
      %v281 = vadd.f32 0.0, %v280
      %v282 = vpop.f32.mrf.mxu0
      %283 = vmatprep.mubr.f32.mxu0 0.0
      %284 = vmatmul.mubr.f32.gmra.mxu0 %v155
      %v285 = vpop.f32.mrf.mxu0
      %v286 = vadd.f32 0.0, %v285
      %v287 = vpop.f32.mrf.mxu0
      %288 = vmatprep.mubr.f32.mxu0 0.0
      %289 = vmatmul.mubr.f32.gmra.mxu0 %v156
      %v290 = vpop.f32.mrf.mxu0
      %v291 = vadd.f32 0.0, %v290
      %v292 = vpop.f32.mrf.mxu0
      %293 = vmatprep.mubr.f32.mxu0 0.0
      %294 = vmatmul.mubr.f32.gmra.mxu0 %v157
      %v295 = vpop.f32.mrf.mxu0
      %v296 = vadd.f32 0.0, %v295
      %v297 = vpop.f32.mrf.mxu0
      %298 = vmatprep.mubr.f32.mxu0 0.0
      %299 = vmatmul.mubr.f32.gmra.mxu0 %v158
      %v300 = vpop.f32.mrf.mxu0
      %v301 = vadd.f32 0.0, %v300
      %v302 = vpop.f32.mrf.mxu0
      %303 = vmatprep.mubr.f32.mxu0 0.0
      %304 = vmatmul.mubr.f32.gmra.mxu0 %v159
      %v305 = vpop.f32.mrf.mxu0
      %v306 = vadd.f32 0.0, %v305
      %v307 = vpop.f32.mrf.mxu0
      %308 = vmatprep.mubr.f32.mxu0 0.0
      %309 = vmatmul.mubr.f32.gmra.mxu0 %v160
      %v310 = vpop.f32.mrf.mxu0
      %v311 = vadd.f32 0.0, %v310
      %v312 = vpop.f32.mrf.mxu0
      %313 = vmatprep.mubr.f32.mxu0 0.0
      %314 = vmatmul.mubr.f32.gmra.mxu0 %v161
      %v315 = vpop.f32.mrf.mxu0
      %v316 = vadd.f32 0.0, %v315
      %v317 = vpop.f32.mrf.mxu0
      %318 = vmatprep.mubr.f32.mxu0 0.0
      %319 = vmatmul.mubr.f32.gmra.mxu0 %v162
      %v320 = vpop.f32.mrf.mxu0
      %v321 = vadd.f32 0.0, %v320
      %v322 = vpop.f32.mrf.mxu0
      %323 = vdwg.mxu0
      %324 = vst [vmem:[%s145] sm:$0xff] %v246
      %325 = vst [vmem:[%s145 + $0x8] sm:$0xff] %v251
      %326 = vst [vmem:[%s145 + $0x10] sm:$0xff] %v256
      %327 = vst [vmem:[%s145 + $0x18] sm:$0xff] %v261
      %328 = vst [vmem:[%s145 + $0x20] sm:$0xff] %v266
      %329 = vst [vmem:[%s145 + $0x28] sm:$0xff] %v271
      %330 = vst [vmem:[%s145 + $0x30] sm:$0xff] %v276
      %331 = vst [vmem:[%s145 + $0x38] sm:$0xff] %v281
      %332 = vst [vmem:[%s145 + $0x40] sm:$0xff] %v286
      %333 = vst [vmem:[%s145 + $0x48] sm:$0xff] %v291
      %334 = vst [vmem:[%s145 + $0x50] sm:$0xff] %v296
      %335 = vst [vmem:[%s145 + $0x58] sm:$0xff] %v301
      %336 = vst [vmem:[%s145 + $0x60] sm:$0xff] %v306
      %337 = vst [vmem:[%s145 + $0x68] sm:$0xff] %v311
      %338 = vst [vmem:[%s145 + $0x70] sm:$0xff] %v316
      %339 = vst [vmem:[%s145 + $0x78] sm:$0xff] %v321
      %s340 = smul.u32 16, %s13
      %p341 = scmp.lt.s32.totalorder %s340, 31
      %s342 = scalar_select %p341, %s340, 31
      %s343 = smul.addr %s342, 8
      %s344 = scalar_lea.vmem %s2, %s343
      // Predicated region
      $region29: #{transition_forward.1} parent=27 // pred_check
        %p345 = pneg %p78
      $region30: #{transition_forward.1} parent=27 // pred_check_branch
        %347 = sbr.rel (%p345) target = $region32
      $region31: #{transition_forward.1} parent=27 // pred_region
        %s348 = smul.u32 16, %s13
      $region32: #{transition_forward.1} parent=27 // pred_fallthru
        _
    $region28: #{transition_forward.1} parent=5 // pred_fallthru
      _
    %p349 = scmp.le.s32.totalorder 2, %s8
    // Predicated region
    $region33: #{transition_forward.1} parent=5 // pred_check
      %p350 = pneg %p349
    $region34: #{transition_forward.1} parent=5 // pred_check_branch
      %352 = sbr.rel (%p350) target = $region36
    $region35: #{transition_forward.1} parent=5 // pred_region
      %s353 = ssub.s32 %s8, 2
      // Predicated region
      $region37: #{transition_forward.1} parent=35 // pred_check
        %p354 = pneg %p84
      $region38: #{transition_forward.1} parent=35 // pred_check_branch
        %356 = sbr.rel (%p354) target = $region40
      $region39: #{transition_forward.1} parent=35 // pred_region
        %s357 = smul.u32 16, %s14
        %p358 = scmp.lt.s32.totalorder %s357, 31
        %s359 = scalar_select %p358, %s357, 31
        %s360 = smul.addr %s359, 8
        %s361 = scalar_lea.vmem %s2, %s360
      $region40: #{transition_forward.1} parent=35 // pred_fallthru
        _
    $region36: #{transition_forward.1} parent=5 // pred_fallthru
      _
  $region6: #{transition_forward.1} parent=0 // loop_footer
    %s12 = sadd.s32 1, %s8
  $region7: #{transition_forward.1} parent=0 // loop_footer_branch
    %7 = sbr.rel target = $region3
  $region8: #{transition_forward.1} parent=0 // loop_exit
    _

</llo_original>
